<compile_context>
chip_gen: v7x
topology: tpu7x:2x2x1
jax: 0.10.0
libtpu: 0.0.40
codegen_flags: <defaults>
</compile_context>

<pallas_src>
import functools

import jax
import jax.numpy as jnp
from jax.experimental import pallas as pl
from jax.experimental.pallas import tpu as pltpu

GROUPS = 4          # spatial rows packed per 128-lane output row
GROUP_W = 32        # lanes per packed row (na*no = 27 valid + 5 pad)
OUT_COLS = GROUPS * GROUP_W  # 128, lane-dense output width


# ---------------- fused Pallas kernel (the single hot path) ----------------

def _fused_kernel(base_ref, p_ref, w1_ref, b1_ref, w2_ref, b2_ref, dec_ref, o_ref,
                  *, tm, H, W, uniform):
    # backbone: 3x3 conv as (4-row packed) block-diag im2col matmul + folded-BN bias + SiLU
    h = jnp.dot(p_ref[...], w1_ref[...], preferred_element_type=jnp.float32)
    h = h + b1_ref[...]
    h = h * jax.nn.sigmoid(h)                                    # SiLU, f32 VPU/EUP

    # detect head: 1x1 conv (block-diag packed -> 128 dense lanes) + bias + sigmoid
    t = jnp.dot(h.astype(jnp.bfloat16), w2_ref[...], preferred_element_type=jnp.float32)
    s = jax.nn.sigmoid(t + b2_ref[...])                          # (tm, 128)

    # fused YOLO decode:  out = alpha*s + beta*s^2 + gamma + gx*selx + gy*sely
    #   xy cols : alpha=2*stride, gamma=-0.5*stride(+g*stride)  -> (2s-0.5+grid)*stride
    #   wh cols : beta=4*anchor*stride                          -> (2s)^2*anchor_grid
    #   obj/cls : alpha=1                                       -> s
    #   pad cols: all zero
    d = dec_ref[...]
    out = s * d[0:1, :] + (s * s) * d[1:2, :] + d[2:3, :]

    # per-tile integer base offsets from SMEM (exact for any batch size); only small in-tile
    # offsets are handled in f32, with multiply-by-inverse instead of divides.
    pid = pl.program_id(0)
    bx = base_ref[0, pid].astype(jnp.float32)        # tile_base_row % W
    by = base_ref[1, pid].astype(jnp.float32)        # (tile_base_row // W) % H
    u = (jax.lax.broadcasted_iota(jnp.int32, (tm, 1), 0) * GROUPS).astype(jnp.float32)
    inv_w = 1.0 / W
    inv_h = 1.0 / H

    def grid_xy(off):
        v = bx + u + off                             # exact small integers in f32
        q = jnp.floor((v + 0.5) * inv_w)             # (bx + 4*i + off) // W
        gx = v - q * W
        yv = by + q
        gy = yv - jnp.floor((yv + 0.5) * inv_h) * H  # (...) % H
        return gx, gy

    if uniform:
        # W % 4 == 0: all 4 packed rows share gy and the gx base; +g is folded into gamma.
        gx, gy = grid_xy(0.0)
        out = out + gx * d[3:4, :] + gy * d[4:5, :]
    else:
        for g in range(GROUPS):
            gx, gy = grid_xy(float(g))
            out = out + gx * d[3 + 2 * g:4 + 2 * g, :] + gy * d[4 + 2 * g:5 + 2 * g, :]

    o_ref[...] = out


def fused_backbone_detect(base_tbl, patches_packed, w1, b1, w2, b2, dec, *, H, W, tm, uniform):
    Mpack, K4 = patches_packed.shape
    C4 = w1.shape[1]
    num_tiles = Mpack // tm
    kernel = functools.partial(_fused_kernel, tm=tm, H=H, W=W, uniform=uniform)
    return pl.pallas_call(
        kernel,
        out_shape=jax.ShapeDtypeStruct((Mpack, OUT_COLS), jnp.float32),
        grid_spec=pltpu.PrefetchScalarGridSpec(
            num_scalar_prefetch=1,                                  # per-tile (bx, by) bases
            grid=(num_tiles,),
            in_specs=[
                pl.BlockSpec((tm, K4), lambda i, b: (i, 0)),        # streamed packed patches (bf16)
                pl.BlockSpec((K4, C4), lambda i, b: (0, 0)),        # resident block-diag conv weight
                pl.BlockSpec((1, C4), lambda i, b: (0, 0)),         # resident folded-BN bias
                pl.BlockSpec((C4, OUT_COLS), lambda i, b: (0, 0)),  # resident block-diag detect weight
                pl.BlockSpec((1, OUT_COLS), lambda i, b: (0, 0)),   # resident detect bias
                pl.BlockSpec((16, OUT_COLS), lambda i, b: (0, 0)),  # resident decode table
            ],
            out_specs=pl.BlockSpec((tm, OUT_COLS), lambda i, b: (i, 0)),
        ),
        compiler_params=pltpu.CompilerParams(
            dimension_semantics=("parallel",),
            vmem_limit_bytes=32 * 1024 * 1024,
        ),
    )(base_tbl, patches_packed, w1, b1, w2, b2, dec)


# ---------------- glue (im2col, weight folding/packing, decode table, reshapes) ----------------

def im2col_3x3_same(x_nhwc):
    N, H, W, C = x_nhwc.shape
    xp = jnp.pad(x_nhwc, ((0, 0), (1, 1), (1, 1), (0, 0)))
    cols = [xp[:, dy:dy + H, dx:dx + W, :] for dy in range(3) for dx in range(3)]
    patches = jnp.stack(cols, axis=3)                  # (N, H, W, 9, C) -> (kh, kw, cin) order
    return patches.reshape(N * H * W, 9 * C)


def build_decode_table(na, no, stride, anchors, uniform):
    # Per-column coefficients so the kernel's decode is a handful of fused VPU ops.
    Cdet = na * no
    lane = jnp.arange(OUT_COLS)
    g = lane // GROUP_W
    c = lane % GROUP_W
    valid = c < Cdet
    a = jnp.clip(c // no, 0, na - 1)
    f = c % no
    is_x = valid & (f == 0)
    is_y = valid & (f == 1)
    is_w = valid & (f == 2)
    is_h = valid & (f == 3)
    is_rest = valid & (f >= 4)

    anchor_grid = anchors * stride                     # (na, 2) in pixels
    aw = anchor_grid[a, 0]
    ah = anchor_grid[a, 1]

    alpha = jnp.where(is_x | is_y, 2.0 * stride, jnp.where(is_rest, 1.0, 0.0))
    beta = jnp.where(is_w, 4.0 * aw, jnp.where(is_h, 4.0 * ah, 0.0))
    gamma = jnp.where(is_x | is_y, -0.5 * stride, 0.0)
    if uniform:
        # fold the per-lane-group +g spatial-x offset into gamma (W % 4 == 0 case)
        gamma = gamma + jnp.where(is_x, g.astype(jnp.float32) * stride, 0.0)

    dec = jnp.zeros((16, OUT_COLS), jnp.float32)
    dec = dec.at[0].set(alpha).at[1].set(beta).at[2].set(gamma)
    if uniform:
        dec = dec.at[3].set(jnp.where(is_x, stride, 0.0))
        dec = dec.at[4].set(jnp.where(is_y, stride, 0.0))
    else:
        for gg in range(GROUPS):
            dec = dec.at[3 + 2 * gg].set(jnp.where(is_x & (g == gg), stride, 0.0))
            dec = dec.at[4 + 2 * gg].set(jnp.where(is_y & (g == gg), stride, 0.0))
    return dec


def traced_model_forward(x_nchw, params, *, tm=1024):
    # tm = packed rows per grid step (= 4*tm original spatial rows); keep tm % 8 == 0.
    assert tm % 8 == 0
    N, Cin, H, W = x_nchw.shape
    na, no = params["na"], params["no"]
    Cdet = na * no
    assert Cdet <= GROUP_W
    stride = params["stride"]

    # ----- backbone prep: NHWC + im2col in bf16 (halves patch materialization bytes) -----
    x_nhwc = jnp.transpose(x_nchw, (0, 2, 3, 1)).astype(jnp.bfloat16)
    patches = im2col_3x3_same(x_nhwc)                                   # (M, 9*Cin) bf16

    # torch conv weight (Cout, Cin, kh, kw) -> (kh, kw, Cin, Cout) -> (9*Cin, Cout); fold BN scale
    w2d = jnp.transpose(params["w_conv"], (2, 3, 1, 0)).reshape(9 * Cin, -1)
    scale = params["gamma"] / jnp.sqrt(params["run_var"] + params["eps"])
    w1f = w2d * scale[None, :]
    b1v = params["beta"] - params["run_mean"] * scale
    Chid = w2d.shape[1]

    # ----- detect head prep: 1x1 conv weight/bias, zero-padded to 32 cols per group -----
    wdet = params["w_det"][:, :, 0, 0].T                                # (Chid, Cdet)
    wpad = jnp.zeros((Chid, GROUP_W), jnp.float32).at[:, :Cdet].set(wdet)
    bpad = jnp.zeros((GROUP_W,), jnp.float32).at[:Cdet].set(params["b_det"])

    # ----- 4-row packing: block-diagonal weights, tiled biases -----
    eye4 = jnp.eye(GROUPS, dtype=jnp.float32)
    w1 = jnp.kron(eye4, w1f).astype(jnp.bfloat16)                       # (4*9*Cin, 4*Chid)
    w2 = jnp.kron(eye4, wpad).astype(jnp.bfloat16)                      # (4*Chid, 128)
    b1 = jnp.tile(b1v, GROUPS)[None, :].astype(jnp.float32)             # (1, 4*Chid)
    b2 = jnp.tile(bpad, GROUPS)[None, :]                                # (1, 128)

    uniform = (W % GROUPS == 0)
    dec = build_decode_table(na, no, stride, params["anchors"], uniform)

    # ----- pad rows to a multiple of 4*tm, pack 4 consecutive rows into one packed row -----
    M = N * H * W
    rows_per_tile = GROUPS * tm
    Mpad = pl.cdiv(M, rows_per_tile) * rows_per_tile
    patches_p = jnp.pad(patches, ((0, Mpad - M), (0, 0))).reshape(Mpad // GROUPS, GROUPS * 9 * Cin)

    # per-tile integer base offsets (exact decode for any batch size)
    num_tiles = Mpad // rows_per_tile
    b = jnp.arange(num_tiles, dtype=jnp.int32) * rows_per_tile
    base_tbl = jnp.stack([b % W, (b // W) % H], axis=0)                 # (2, num_tiles) int32

    out = fused_backbone_detect(base_tbl, patches_p, w1, b1, w2, b2, dec,
                                H=H, W=W, tm=tm, uniform=uniform)

    # free row-major unpack of the 4-row packing, then the torch Detect view/permute
    det = out.reshape(Mpad, GROUP_W)[:M, :Cdet]
    det = det.reshape(N, H, W, na, no).transpose(0, 3, 1, 2, 4)
    return det.reshape(N, -1, no)


# ---------------- pure-JAX reference (f32, no Pallas) for a correctness check ----------------

def reference_forward(x_nchw, params):
    N, Cin, H, W = x_nchw.shape
    na, no = params["na"], params["no"]
    x_nhwc = jnp.transpose(x_nchw, (0, 2, 3, 1))
    patches = im2col_3x3_same(x_nhwc)
    w2d = jnp.transpose(params["w_conv"], (2, 3, 1, 0)).reshape(9 * Cin, -1)
    scale = params["gamma"] / jnp.sqrt(params["run_var"] + params["eps"])
    bias = params["beta"] - params["run_mean"] * scale
    h = (patches @ w2d) * scale + bias
    h = h * jax.nn.sigmoid(h)
    det = jax.nn.sigmoid(h @ params["w_det"][:, :, 0, 0].T + params["b_det"])
    y = det.reshape(N, H, W, na, no).transpose(0, 3, 1, 2, 4)
    stride, anchors = params["stride"], params["anchors"]
    yv, xv = jnp.meshgrid(jnp.arange(H, dtype=jnp.float32),
                          jnp.arange(W, dtype=jnp.float32), indexing="ij")
    grid = jnp.stack([xv, yv], axis=-1)
    xy = (y[..., 0:2] * 2.0 - 0.5 + grid) * stride
    wh = (y[..., 2:4] * 2.0) ** 2 * (anchors.reshape(1, na, 1, 1, 2) * stride)
    return jnp.concatenate([xy, wh, y[..., 4:]], axis=-1).reshape(N, -1, no)


# ---------------- main ----------------

if __name__ == "__main__":
    key = jax.random.PRNGKey(0)
    Cin, Chid = 3, 32               # backbone hidden channels (4*Chid = 128 packed lanes)
    nc, na = 4, 3
    no = nc + 5                     # 9
    Cdet = na * no                  # 27

    ks = jax.random.split(key, 10)
    params = {
        "w_conv": jax.random.normal(ks[0], (Chid, Cin, 3, 3), jnp.float32) * 0.1,
        "gamma": 1.0 + 0.1 * jax.random.normal(ks[1], (Chid,), jnp.float32),
        "beta": 0.1 * jax.random.normal(ks[2], (Chid,), jnp.float32),
        "run_mean": 0.1 * jax.random.normal(ks[3], (Chid,), jnp.float32),
        "run_var": jax.nn.softplus(jax.random.normal(ks[4], (Chid,), jnp.float32)) + 0.5,
        "eps": 1e-5,
        "w_det": jax.random.normal(ks[5], (Cdet, Chid, 1, 1), jnp.float32) * 0.1,
        "b_det": 0.1 * jax.random.normal(ks[6], (Cdet,), jnp.float32),
        "na": na, "no": no,
        "stride": 8.0,
        "anchors": jnp.array([[10., 13.], [16., 30.], [33., 23.]], jnp.float32) / 8.0,
    }

    # Two geometries: W % 4 == 0 exercises the folded group-offset decode; W % 4 != 0 exercises
    # the general per-group decode. tm=64 packed rows at these toy sizes gives a multi-tile grid
    # and a padded-row tail. Production default is tm=1024 packed (= 4096 rows per step).
    configs = [(2, 3, 16, 20), (2, 3, 16, 18)]
    for idx, (N, Cin_c, H, W) in enumerate(configs):
        x = jax.random.normal(ks[7 + idx], (N, Cin_c, H, W), jnp.float32)
        fwd = jax.jit(lambda xx: traced_model_forward(xx, params, tm=64))
        out = fwd(x)
        jax.block_until_ready(out)
        assert out.shape == (N, na * H * W, no)
        ref = reference_forward(x, params)
        max_err = float(jnp.max(jnp.abs(out - ref)))
        assert jnp.allclose(out, ref, rtol=2e-2, atol=1e-1), f"cfg{idx} max abs err {max_err}"

    print("KERNEL_OK")
</pallas_src>

<mosaic_0001>
module attributes {stable_mosaic.version = 11 : i64} {
  func.func @_fused_kernel(%arg0: i32, %arg1: memref<2x3xi32, #tpu.memory_space<smem>>, %arg2: memref<64x108xbf16, #tpu.memory_space<vmem>>, %arg3: memref<108x128xbf16, #tpu.memory_space<vmem>>, %arg4: memref<1x128xf32, #tpu.memory_space<vmem>>, %arg5: memref<128x128xbf16, #tpu.memory_space<vmem>>, %arg6: memref<1x128xf32, #tpu.memory_space<vmem>>, %arg7: memref<16x128xf32, #tpu.memory_space<vmem>>, %arg8: memref<64x128xf32, #tpu.memory_space<vmem>>) attributes {dimension_semantics = [#tpu.dimension_semantics<parallel>], iteration_bounds = array<i64: 3>, scalar_prefetch = 1 : i64, scratch_operands = 0 : i64, tpu.core_type = #tpu.core_type<tc>, window_params = [{transform_indices = @transform_0, window_bounds = array<i64: 64, 108>}, {pipeline_mode = #tpu.pipeline_mode<synchronous>, transform_indices = @transform_1, window_bounds = array<i64: 108, 128>}, {pipeline_mode = #tpu.pipeline_mode<synchronous>, transform_indices = @transform_2, window_bounds = array<i64: 1, 128>}, {pipeline_mode = #tpu.pipeline_mode<synchronous>, transform_indices = @transform_3, window_bounds = array<i64: 128, 128>}, {pipeline_mode = #tpu.pipeline_mode<synchronous>, transform_indices = @transform_4, window_bounds = array<i64: 1, 128>}, {pipeline_mode = #tpu.pipeline_mode<synchronous>, transform_indices = @transform_5, window_bounds = array<i64: 16, 128>}, {transform_indices = @transform_6, window_bounds = array<i64: 64, 128>}]} {
    %c0 = arith.constant 0 : index
    %c0_0 = arith.constant 0 : index
    %0 = vector.load %arg2[%c0, %c0_0] : memref<64x108xbf16, #tpu.memory_space<vmem>>, vector<64x108xbf16>
    %c0_1 = arith.constant 0 : index
    %c0_2 = arith.constant 0 : index
    %1 = vector.load %arg3[%c0_1, %c0_2] : memref<108x128xbf16, #tpu.memory_space<vmem>>, vector<108x128xbf16>
    %cst = arith.constant dense<0.000000e+00> : vector<64x128xf32>
    %2 = tpu.matmul %0, %1, %cst {dimension_numbers = #tpu.dot_dimension_numbers<[1], [0], [0], [1], [0, 0, 1, 1], [], []>} : vector<64x108xbf16>, vector<108x128xbf16>, vector<64x128xf32> -> vector<64x128xf32>
    %c0_3 = arith.constant 0 : index
    %c0_4 = arith.constant 0 : index
    %3 = vector.load %arg4[%c0_3, %c0_4] : memref<1x128xf32, #tpu.memory_space<vmem>>, vector<1x128xf32>
    %4 = vector.broadcast %3 : vector<1x128xf32> to vector<64x128xf32>
    %5 = arith.addf %2, %4 : vector<64x128xf32>
    %6 = arith.negf %5 : vector<64x128xf32>
    %7 = math.exp %6 : vector<64x128xf32>
    %cst_5 = arith.constant 1.000000e+00 : f32
    %8 = vector.broadcast %cst_5 : f32 to vector<64x128xf32>
    %9 = arith.addf %8, %7 : vector<64x128xf32>
    %10 = arith.divf %8, %9 : vector<64x128xf32>
    %11 = arith.mulf %5, %10 : vector<64x128xf32>
    %12 = arith.truncf %11 : vector<64x128xf32> to vector<64x128xbf16>
    %c0_6 = arith.constant 0 : index
    %c0_7 = arith.constant 0 : index
    %13 = vector.load %arg5[%c0_6, %c0_7] : memref<128x128xbf16, #tpu.memory_space<vmem>>, vector<128x128xbf16>
    %cst_8 = arith.constant dense<0.000000e+00> : vector<64x128xf32>
    %14 = tpu.matmul %12, %13, %cst_8 {dimension_numbers = #tpu.dot_dimension_numbers<[1], [0], [0], [1], [0, 0, 1, 1], [], []>} : vector<64x128xbf16>, vector<128x128xbf16>, vector<64x128xf32> -> vector<64x128xf32>
    %c0_9 = arith.constant 0 : index
    %c0_10 = arith.constant 0 : index
    %15 = vector.load %arg6[%c0_9, %c0_10] : memref<1x128xf32, #tpu.memory_space<vmem>>, vector<1x128xf32>
    %16 = vector.broadcast %15 : vector<1x128xf32> to vector<64x128xf32>
    %17 = arith.addf %14, %16 : vector<64x128xf32>
    %18 = arith.negf %17 : vector<64x128xf32>
    %19 = math.exp %18 : vector<64x128xf32>
    %cst_11 = arith.constant 1.000000e+00 : f32
    %20 = vector.broadcast %cst_11 : f32 to vector<64x128xf32>
    %21 = arith.addf %20, %19 : vector<64x128xf32>
    %22 = arith.divf %20, %21 : vector<64x128xf32>
    %c0_12 = arith.constant 0 : index
    %c0_13 = arith.constant 0 : index
    %23 = vector.load %arg7[%c0_12, %c0_13] : memref<16x128xf32, #tpu.memory_space<vmem>>, vector<16x128xf32>
    %24 = vector.extract_strided_slice %23 {offsets = [0, 0], sizes = [1, 128], strides = [1, 1]} : vector<16x128xf32> to vector<1x128xf32>
    %25 = vector.broadcast %24 : vector<1x128xf32> to vector<64x128xf32>
    %26 = arith.mulf %22, %25 : vector<64x128xf32>
    %27 = arith.mulf %22, %22 : vector<64x128xf32>
    %28 = vector.extract_strided_slice %23 {offsets = [1, 0], sizes = [1, 128], strides = [1, 1]} : vector<16x128xf32> to vector<1x128xf32>
    %29 = vector.broadcast %28 : vector<1x128xf32> to vector<64x128xf32>
    %30 = arith.mulf %27, %29 : vector<64x128xf32>
    %31 = arith.addf %26, %30 : vector<64x128xf32>
    %32 = vector.extract_strided_slice %23 {offsets = [2, 0], sizes = [1, 128], strides = [1, 1]} : vector<16x128xf32> to vector<1x128xf32>
    %33 = vector.broadcast %32 : vector<1x128xf32> to vector<64x128xf32>
    %34 = arith.addf %31, %33 : vector<64x128xf32>
    %c0_14 = arith.constant 0 : index
    %35 = arith.index_cast %arg0 : i32 to index
    %36 = memref.load %arg1[%c0_14, %35] : memref<2x3xi32, #tpu.memory_space<smem>>
    %37 = arith.sitofp %36 : i32 to f32
    %c1 = arith.constant 1 : index
    %38 = arith.index_cast %arg0 : i32 to index
    %39 = memref.load %arg1[%c1, %38] : memref<2x3xi32, #tpu.memory_space<smem>>
    %40 = arith.sitofp %39 : i32 to f32
    %41 = tpu.iota {dimensions = array<i32: 0>} : vector<64x1xi32>
    %c4_i32 = arith.constant 4 : i32
    %42 = vector.broadcast %c4_i32 : i32 to vector<64x1xi32>
    %43 = arith.muli %41, %42 : vector<64x1xi32>
    %44 = arith.sitofp %43 : vector<64x1xi32> to vector<64x1xf32>
    %45 = vector.broadcast %37 : f32 to vector<64x1xf32>
    %46 = arith.addf %45, %44 : vector<64x1xf32>
    %cst_15 = arith.constant 0.000000e+00 : f32
    %47 = vector.broadcast %cst_15 : f32 to vector<64x1xf32>
    %48 = arith.addf %46, %47 : vector<64x1xf32>
    %cst_16 = arith.constant 5.000000e-01 : f32
    %49 = vector.broadcast %cst_16 : f32 to vector<64x1xf32>
    %50 = arith.addf %48, %49 : vector<64x1xf32>
    %cst_17 = arith.constant 5.000000e-02 : f32
    %51 = vector.broadcast %cst_17 : f32 to vector<64x1xf32>
    %52 = arith.mulf %50, %51 : vector<64x1xf32>
    %53 = math.floor %52 : vector<64x1xf32>
    %cst_18 = arith.constant 2.000000e+01 : f32
    %54 = vector.broadcast %cst_18 : f32 to vector<64x1xf32>
    %55 = arith.mulf %53, %54 : vector<64x1xf32>
    %56 = arith.subf %48, %55 : vector<64x1xf32>
    %57 = vector.broadcast %40 : f32 to vector<64x1xf32>
    %58 = arith.addf %57, %53 : vector<64x1xf32>
    %cst_19 = arith.constant 5.000000e-01 : f32
    %59 = vector.broadcast %cst_19 : f32 to vector<64x1xf32>
    %60 = arith.addf %58, %59 : vector<64x1xf32>
    %cst_20 = arith.constant 6.250000e-02 : f32
    %61 = vector.broadcast %cst_20 : f32 to vector<64x1xf32>
    %62 = arith.mulf %60, %61 : vector<64x1xf32>
    %63 = math.floor %62 : vector<64x1xf32>
    %cst_21 = arith.constant 1.600000e+01 : f32
    %64 = vector.broadcast %cst_21 : f32 to vector<64x1xf32>
    %65 = arith.mulf %63, %64 : vector<64x1xf32>
    %66 = arith.subf %58, %65 : vector<64x1xf32>
    %67 = vector.extract_strided_slice %23 {offsets = [3, 0], sizes = [1, 128], strides = [1, 1]} : vector<16x128xf32> to vector<1x128xf32>
    %68 = vector.broadcast %56 : vector<64x1xf32> to vector<64x128xf32>
    %69 = vector.broadcast %67 : vector<1x128xf32> to vector<64x128xf32>
    %70 = arith.mulf %68, %69 : vector<64x128xf32>
    %71 = arith.addf %34, %70 : vector<64x128xf32>
    %72 = vector.extract_strided_slice %23 {offsets = [4, 0], sizes = [1, 128], strides = [1, 1]} : vector<16x128xf32> to vector<1x128xf32>
    %73 = vector.broadcast %66 : vector<64x1xf32> to vector<64x128xf32>
    %74 = vector.broadcast %72 : vector<1x128xf32> to vector<64x128xf32>
    %75 = arith.mulf %73, %74 : vector<64x128xf32>
    %76 = arith.addf %71, %75 : vector<64x128xf32>
    %c0_22 = arith.constant 0 : index
    %c0_23 = arith.constant 0 : index
    %77 = vector.load %arg8[%c0_22, %c0_23] : memref<64x128xf32, #tpu.memory_space<vmem>>, vector<64x128xf32>
    tpu.vector_store %arg8[%c0_22, %c0_23], %76 {strides = array<i32>} : memref<64x128xf32, #tpu.memory_space<vmem>>, vector<64x128xf32>,
    return
  }
  func.func @transform_0(%arg0: i32, %arg1: memref<2x3xi32, #tpu.memory_space<smem>>) -> (i32, i32) {
    %c0_i32 = arith.constant 0 : i32
    %c0_i32_0 = arith.constant 0 : i32
    return %arg0, %c0_i32 : i32, i32
  }
  func.func @transform_1(%arg0: i32, %arg1: memref<2x3xi32, #tpu.memory_space<smem>>) -> (i32, i32) {
    %c0_i32 = arith.constant 0 : i32
    %c0_i32_0 = arith.constant 0 : i32
    %c0_i32_1 = arith.constant 0 : i32
    return %c0_i32, %c0_i32_0 : i32, i32
  }
  func.func @transform_2(%arg0: i32, %arg1: memref<2x3xi32, #tpu.memory_space<smem>>) -> (i32, i32) {
    %c0_i32 = arith.constant 0 : i32
    %c0_i32_0 = arith.constant 0 : i32
    %c0_i32_1 = arith.constant 0 : i32
    return %c0_i32, %c0_i32_0 : i32, i32
  }
  func.func @transform_3(%arg0: i32, %arg1: memref<2x3xi32, #tpu.memory_space<smem>>) -> (i32, i32) {
    %c0_i32 = arith.constant 0 : i32
    %c0_i32_0 = arith.constant 0 : i32
    %c0_i32_1 = arith.constant 0 : i32
    return %c0_i32, %c0_i32_0 : i32, i32
  }
  func.func @transform_4(%arg0: i32, %arg1: memref<2x3xi32, #tpu.memory_space<smem>>) -> (i32, i32) {
    %c0_i32 = arith.constant 0 : i32
    %c0_i32_0 = arith.constant 0 : i32
    %c0_i32_1 = arith.constant 0 : i32
    return %c0_i32, %c0_i32_0 : i32, i32
  }
  func.func @transform_5(%arg0: i32, %arg1: memref<2x3xi32, #tpu.memory_space<smem>>) -> (i32, i32) {
    %c0_i32 = arith.constant 0 : i32
    %c0_i32_0 = arith.constant 0 : i32
    %c0_i32_1 = arith.constant 0 : i32
    return %c0_i32, %c0_i32_0 : i32, i32
  }
  func.func @transform_6(%arg0: i32, %arg1: memref<2x3xi32, #tpu.memory_space<smem>>) -> (i32, i32) {
    %c0_i32 = arith.constant 0 : i32
    %c0_i32_0 = arith.constant 0 : i32
    return %arg0, %c0_i32 : i32, i32
  }
}

</mosaic_0001>

<llo_original>
// kernel: tile.11
$region0: #{tile.11}
  #allocation0 [shape = 's32[1]{0}', space=sflag, size = 0x4, scoped, tag = 'scoped memory for tile.11']
  %s0 = inlined_call_operand.vmem [shape: f32[32], index: 0, kind: input, shape index: {}]
  %s1 = inlined_call_operand.vmem [shape: f32[4,32], index: 1, kind: output, shape index: {}]
  // Predicated region
  $region2: #{tile.11} parent=0 // pred_check
    _
  $region3: #{tile.11} parent=0 // pred_check_branch
    %3 = sbr.rel (0) target = $region5
  $region4: #{tile.11} parent=0 // pred_region
    _
  $region5: #{tile.11} parent=0 // pred_fallthru
    _
  %v4 = vld [vmem:[%s0] ss:$0 sm:$0xff]
  %5 = vst [vmem:[%s1] sm:$0xf] %v4

// kernel: tile.12
$region0: #{tile.12}
  %s0 = inlined_call_operand.vmem [shape: f32[4,32], index: 0, kind: input, shape index: {}]
  %s1 = inlined_call_operand.vmem [shape: f32[1,128], index: 1, kind: output, shape index: {}]
  $region1: #{tile.12} parent=0
    #allocation0 [shape = 'u8[4096]{0}', space=vmem, size = 0x1000, scoped, tag = 'scoped mem for output reshape']
    #allocation1 [shape = 'u8[4096]{0}', space=vmem, size = 0x1000, scoped, tag = 'scoped mem for input reshape']
    %s3 = sshllo.u32 0, 4
    %v4 = vld [vmem:[%s0] sm:%s3]
    %5 = vst [vmem:[#allocation1] sm:%s3] %v4
    %v6 = vld [vmem:[#allocation1] sm:$0x1]
    %vm7 = vcmask 261120
    %8 = vst.msk [vmem:[#allocation0] sm:$0x1] %vm7, %v6
    %s9 = scalar_lea.vmem [#allocation1], 3
    %v10 = vld [vmem:[%s9] sm:$0x1]
    %11 = vrot.lane.b32.xlu0 %v10, 96
    %v12 = vpop.permute.xlu0 %11
    %vm13 = vcmask 1048320
    %14 = vst.msk [vmem:[#allocation0] sm:$0x1] %vm13, %v12
    %s15 = scalar_lea.vmem [#allocation1], 2
    %v16 = vld [vmem:[%s15] sm:$0x1]
    %17 = vrot.lane.b32.xlu0 %v16, 64
    %v18 = vpop.permute.xlu0 %17
    %vm19 = vcmask 785920
    %20 = vst.msk [vmem:[#allocation0] sm:$0x1] %vm19, %v18
    %s21 = scalar_lea.vmem [#allocation1], 1
    %v22 = vld [vmem:[%s21] sm:$0x1]
    %23 = vrot.lane.b32.xlu0 %v22, 32
    %v24 = vpop.permute.xlu0 %23
    %vm25 = vcmask 523520
    %26 = vst.msk [vmem:[#allocation0] sm:$0x1] %vm25, %v24
    %s28 = sshllo.u32 0, 1
    %v30 = vld [vmem:[#allocation0] sm:%s28]
    %s31 = sshllo.u32 0, 1
    %32 = vst [vmem:[%s1] sm:%s31] %v30

// kernel: _lambda_.1
$region0: #{_lambda_.1}
  #allocation0 [shape = 'u32[]', space=smem, size = 0x4, offset = 0x4, fixed_abs, tag = 'smem constant byte address 0x4 - core index']
  #allocation1 [shape = 'u32[144,128]{1,0:T(1,128)}', space=vmem, size = 0x12000, scoped, tag = 'internal scratch']
  #allocation2 [shape = 's32[1]{0}', space=sflag, size = 0x4, scoped, tag = 'scoped memory for _lambda_.1']
  #allocation3 [shape = 'u8[1024]{0}', space=smem, size = 0x400, scoped, tag = 'prefetched SMEM operand 0']
  %s0 = inlined_call_operand.vmem [shape: s32[2,3], index: 0, kind: input, shape index: {}]
  %s1 = inlined_call_operand.vmem [shape: bf16[192,108], index: 1, kind: input, shape index: {}]
  %s2 = inlined_call_operand.vmem [shape: bf16[108,128], index: 2, kind: input, shape index: {}]
  %s3 = inlined_call_operand.vmem [shape: f32[1,128], index: 3, kind: input, shape index: {}]
  %s4 = inlined_call_operand.vmem [shape: bf16[128,128], index: 4, kind: input, shape index: {}]
  %s5 = inlined_call_operand.vmem [shape: f32[1,128], index: 5, kind: input, shape index: {}]
  %s6 = inlined_call_operand.vmem [shape: f32[16,128], index: 6, kind: input, shape index: {}]
  %s7 = inlined_call_operand.vmem [shape: f32[192,128], index: 7, kind: output, shape index: {}]
  %s8 = sld [smem:[#allocation0]]
  $region57: #{_lambda_.1} parent=0
    _
  %s10 = ssub.s32 1, %s8
  %s11 = scalar_select 0, %s10, %s8
  %s12 = sshll.u32 %s0, 4
  %s13 = int_to_ptr.vmem [resolvable:$true] %s12
  %15 = dma.vmem_to_smem %s13, 32, [#allocation3], [#allocation2]
  %16 = dma.done [#allocation2], 32
  %17 = sfence
  loop: start=0, step=1, limit=5
  $region2: #{_lambda_.1} parent=0 // loop_pre_header
    _
  $region3: #{_lambda_.1} parent=0 // loop_header
    %s19 = sphi 0, %s23
    %p20 = scmp.ge.s32.totalorder %s19, 5
    %s29 = sphi 0, %s31
    %s32 = sphi 0, %s29
    %s33 = sphi 0, %s32
    %s49 = sphi 0, %s33
    %s53 = sphi 0, %s53
    %s55 = sphi 0, %s53
    %s56 = sphi 0, %s55
    %s70 = sphi 0, %s56
    %s74 = sphi 0, %s74
    %s76 = sphi 0, %s74
    %s77 = sphi 0, %s76
    %s91 = sphi 0, %s77
    %s95 = sphi 0, %s95
    %s97 = sphi 0, %s95
    %s98 = sphi 0, %s97
    %s112 = sphi 0, %s98
    %s116 = sphi 0, %s116
    %s118 = sphi 0, %s116
    %s119 = sphi 0, %s118
    %s133 = sphi 0, %s119
    %s137 = sphi 0, %s137
    %s139 = sphi 0, %s137
    %s140 = sphi 0, %s139
    %s154 = sphi 0, %s140
    %s160 = sphi 0, %s162
    %s163 = sphi 0, %s160
    %s164 = sphi 0, %s163
    %s180 = sphi 0, %s164
  $region4: #{_lambda_.1} parent=0 // loop_header_branch
    %22 = sbr.rel (%p20) target = $region8
  $region5: #{_lambda_.1} parent=0 // loop_body
    %s24 = ssub.s32 %s19, 1
    %s25 = ssub.s32 %s19, 2
    %s26 = sadd.s32 %s19, 1
    %s27 = ssub.s32 %s19, %s26
    %p28 = scmp.eq.s32.totalorder %s27, 0
    %s30 = sadd.s32 %s29, 1
    %s31 = scalar_select %p28, %s29, %s30
    %p34 = pneg %p28
    %p35 = scmp.eq.s32.totalorder %s19, 2
    %p36 = por %p34, %p35
    %p37 = scmp.ne.s32.totalorder %s29, %s32
    %p38 = scmp.eq.s32.totalorder %s19, 0
    %p39 = por %p37, %p38
    %p40 = scmp.ne.s32.totalorder %s29, %s32
    %p41 = scmp.eq.s32.totalorder %s24, 2
    %p42 = por %p40, %p41
    %p43 = scmp.ne.s32.totalorder %s32, %s33
    %p44 = scmp.eq.s32.totalorder %s24, 0
    %p45 = por %p43, %p44
    %p46 = scmp.ne.s32.totalorder %s32, %s33
    %p47 = scmp.eq.s32.totalorder %s25, 2
    %p48 = por %p46, %p47
    %p50 = scmp.ne.s32.totalorder %s33, %s49
    %p51 = scmp.eq.s32.totalorder %s25, 0
    %p52 = por %p50, %p51
    %s54 = sadd.s32 %s53, 1
    %p57 = scmp.eq.s32.totalorder %s19, 2
    %p58 = scmp.ne.s32.totalorder %s53, %s55
    %p59 = scmp.eq.s32.totalorder %s19, 0
    %p60 = por %p58, %p59
    %p61 = scmp.ne.s32.totalorder %s53, %s55
    %p62 = scmp.eq.s32.totalorder %s24, 2
    %p63 = por %p61, %p62
    %p64 = scmp.ne.s32.totalorder %s55, %s56
    %p65 = scmp.eq.s32.totalorder %s24, 0
    %p66 = por %p64, %p65
    %p67 = scmp.ne.s32.totalorder %s55, %s56
    %p68 = scmp.eq.s32.totalorder %s25, 2
    %p69 = por %p67, %p68
    %p71 = scmp.ne.s32.totalorder %s56, %s70
    %p72 = scmp.eq.s32.totalorder %s25, 0
    %p73 = por %p71, %p72
    %s75 = sadd.s32 %s74, 1
    %p78 = scmp.eq.s32.totalorder %s19, 2
    %p79 = scmp.ne.s32.totalorder %s74, %s76
    %p80 = scmp.eq.s32.totalorder %s19, 0
    %p81 = por %p79, %p80
    %p82 = scmp.ne.s32.totalorder %s74, %s76
    %p83 = scmp.eq.s32.totalorder %s24, 2
    %p84 = por %p82, %p83
    %p85 = scmp.ne.s32.totalorder %s76, %s77
    %p86 = scmp.eq.s32.totalorder %s24, 0
    %p87 = por %p85, %p86
    %p88 = scmp.ne.s32.totalorder %s76, %s77
    %p89 = scmp.eq.s32.totalorder %s25, 2
    %p90 = por %p88, %p89
    %p92 = scmp.ne.s32.totalorder %s77, %s91
    %p93 = scmp.eq.s32.totalorder %s25, 0
    %p94 = por %p92, %p93
    %s96 = sadd.s32 %s95, 1
    %p99 = scmp.eq.s32.totalorder %s19, 2
    %p100 = scmp.ne.s32.totalorder %s95, %s97
    %p101 = scmp.eq.s32.totalorder %s19, 0
    %p102 = por %p100, %p101
    %p103 = scmp.ne.s32.totalorder %s95, %s97
    %p104 = scmp.eq.s32.totalorder %s24, 2
    %p105 = por %p103, %p104
    %p106 = scmp.ne.s32.totalorder %s97, %s98
    %p107 = scmp.eq.s32.totalorder %s24, 0
    %p108 = por %p106, %p107
    %p109 = scmp.ne.s32.totalorder %s97, %s98
    %p110 = scmp.eq.s32.totalorder %s25, 2
    %p111 = por %p109, %p110
    %p113 = scmp.ne.s32.totalorder %s98, %s112
    %p114 = scmp.eq.s32.totalorder %s25, 0
    %p115 = por %p113, %p114
    %s117 = sadd.s32 %s116, 1
    %p120 = scmp.eq.s32.totalorder %s19, 2
    %p121 = scmp.ne.s32.totalorder %s116, %s118
    %p122 = scmp.eq.s32.totalorder %s19, 0
    %p123 = por %p121, %p122
    %p124 = scmp.ne.s32.totalorder %s116, %s118
    %p125 = scmp.eq.s32.totalorder %s24, 2
    %p126 = por %p124, %p125
    %p127 = scmp.ne.s32.totalorder %s118, %s119
    %p128 = scmp.eq.s32.totalorder %s24, 0
    %p129 = por %p127, %p128
    %p130 = scmp.ne.s32.totalorder %s118, %s119
    %p131 = scmp.eq.s32.totalorder %s25, 2
    %p132 = por %p130, %p131
    %p134 = scmp.ne.s32.totalorder %s119, %s133
    %p135 = scmp.eq.s32.totalorder %s25, 0
    %p136 = por %p134, %p135
    %s138 = sadd.s32 %s137, 1
    %p141 = scmp.eq.s32.totalorder %s19, 2
    %p142 = scmp.ne.s32.totalorder %s137, %s139
    %p143 = scmp.eq.s32.totalorder %s19, 0
    %p144 = por %p142, %p143
    %p145 = scmp.ne.s32.totalorder %s137, %s139
    %p146 = scmp.eq.s32.totalorder %s24, 2
    %p147 = por %p145, %p146
    %p148 = scmp.ne.s32.totalorder %s139, %s140
    %p149 = scmp.eq.s32.totalorder %s24, 0
    %p150 = por %p148, %p149
    %p151 = scmp.ne.s32.totalorder %s139, %s140
    %p152 = scmp.eq.s32.totalorder %s25, 2
    %p153 = por %p151, %p152
    %p155 = scmp.ne.s32.totalorder %s140, %s154
    %p156 = scmp.eq.s32.totalorder %s25, 0
    %p157 = por %p155, %p156
    %s158 = ssub.s32 %s19, %s26
    %p159 = scmp.eq.s32.totalorder %s158, 0
    %s161 = sadd.s32 %s160, 1
    %s162 = scalar_select %p159, %s160, %s161
    %p165 = pneg %p159
    %p166 = scmp.eq.s32.totalorder %s19, 2
    %p167 = por %p165, %p166
    %p168 = scmp.ne.s32.totalorder %s160, %s163
    %p169 = scmp.eq.s32.totalorder %s19, 0
    %p170 = por %p168, %p169
    %p171 = scmp.ne.s32.totalorder %s160, %s163
    %p172 = scmp.eq.s32.totalorder %s24, 2
    %p173 = por %p171, %p172
    %p174 = scmp.ne.s32.totalorder %s163, %s164
    %p175 = scmp.eq.s32.totalorder %s24, 0
    %p176 = por %p174, %p175
    %p177 = scmp.ne.s32.totalorder %s163, %s164
    %p178 = scmp.eq.s32.totalorder %s25, 2
    %p179 = por %p177, %p178
    %p181 = scmp.ne.s32.totalorder %s164, %s180
    %p182 = scmp.eq.s32.totalorder %s25, 0
    %p183 = por %p181, %p182
    %p184 = scmp.le.s32.totalorder 1, %s19
    %p185 = scmp.lt.s32.totalorder %s19, 4
    %p186 = pnand %p184, %p185
    %p187 = pneg %p186
    // Predicated region
    $region9: #{_lambda_.1} parent=5 // pred_check
      _
    $region10: #{_lambda_.1} parent=5 // pred_check_branch
      %189 = sbr.rel (%p186) target = $region12
    $region11: #{_lambda_.1} parent=5 // pred_region
      %s190 = ssub.s32 %s19, 1
      // Predicated region
      $region13: #{_lambda_.1} parent=11 // pred_check
        %p191 = pneg %p66
      $region14: #{_lambda_.1} parent=11 // pred_check_branch
        %193 = sbr.rel (%p191) target = $region16
      $region15: #{_lambda_.1} parent=11 // pred_region
        _
      $region16: #{_lambda_.1} parent=11 // pred_fallthru
        _
      // Predicated region
      $region17: #{_lambda_.1} parent=11 // pred_check
        %p194 = pneg %p87
      $region18: #{_lambda_.1} parent=11 // pred_check_branch
        %196 = sbr.rel (%p194) target = $region20
      $region19: #{_lambda_.1} parent=11 // pred_region
        _
      $region20: #{_lambda_.1} parent=11 // pred_fallthru
        _
      // Predicated region
      $region21: #{_lambda_.1} parent=11 // pred_check
        %p197 = pneg %p108
      $region22: #{_lambda_.1} parent=11 // pred_check_branch
        %199 = sbr.rel (%p197) target = $region24
      $region23: #{_lambda_.1} parent=11 // pred_region
        _
      $region24: #{_lambda_.1} parent=11 // pred_fallthru
        _
      // Predicated region
      $region25: #{_lambda_.1} parent=11 // pred_check
        %p200 = pneg %p129
      $region26: #{_lambda_.1} parent=11 // pred_check_branch
        %202 = sbr.rel (%p200) target = $region28
      $region27: #{_lambda_.1} parent=11 // pred_region
        _
      $region28: #{_lambda_.1} parent=11 // pred_fallthru
        _
      // Predicated region
      $region29: #{_lambda_.1} parent=11 // pred_check
        %p203 = pneg %p150
      $region30: #{_lambda_.1} parent=11 // pred_check_branch
        %205 = sbr.rel (%p203) target = $region32
      $region31: #{_lambda_.1} parent=11 // pred_region
        _
      $region32: #{_lambda_.1} parent=11 // pred_fallthru
        _
    $region12: #{_lambda_.1} parent=5 // pred_fallthru
      _
    %p206 = scmp.lt.s32.totalorder %s19, 3
    // Predicated region
    $region33: #{_lambda_.1} parent=5 // pred_check
      %p207 = pneg %p206
    $region34: #{_lambda_.1} parent=5 // pred_check_branch
      %209 = sbr.rel (%p207) target = $region36
    $region35: #{_lambda_.1} parent=5 // pred_region
      // Predicated region
      $region37: #{_lambda_.1} parent=35 // pred_check
        %p210 = pneg %p39
      $region38: #{_lambda_.1} parent=35 // pred_check_branch
        %212 = sbr.rel (%p210) target = $region40
      $region39: #{_lambda_.1} parent=35 // pred_region
        %s213 = smul.u32 8, %s19
        %p214 = scmp.lt.s32.totalorder %s213, 23
        %s215 = scalar_select %p214, %s213, 23
        %s216 = smul.addr %s215, 4
        %s217 = scalar_lea.vmem %s1, %s216
        %s218 = smul.u32 8, %s19
      $region40: #{_lambda_.1} parent=35 // pred_fallthru
        _
    $region36: #{_lambda_.1} parent=5 // pred_fallthru
      _
    %p219 = scmp.le.s32.totalorder 1, %s19
    %p220 = scmp.lt.s32.totalorder %s19, 4
    %p221 = pnand %p219, %p220
    %p222 = pneg %p221
    // Predicated region
    $region41: #{_lambda_.1} parent=5 // pred_check
      _
    $region42: #{_lambda_.1} parent=5 // pred_check_branch
      %224 = sbr.rel (%p221) target = $region44
    $region43: #{_lambda_.1} parent=5 // pred_region
      %s225 = ssub.s32 %s19, 1
      %s226 = smul.u32 8, %s24
      %p227 = scmp.lt.s32.totalorder %s226, 23
      %s228 = scalar_select %p227, %s226, 23
      %s229 = smul.addr %s228, 4
      %s230 = scalar_lea.vmem %s1, %s229
      %p231 = pneg %p45
      %p232 = pneg %p42
      %p233 = pneg %p66
      %p234 = pneg %p63
      %p235 = pneg %p87
      %p236 = pneg %p84
      %p237 = pneg %p108
      %p238 = pneg %p105
      %p239 = pneg %p129
      %p240 = pneg %p126
      %p241 = pneg %p150
      %p242 = pneg %p147
      %p243 = pneg %p176
      %p244 = pneg %p173
      %s245 = smul.u32 8, %s24
      %p246 = scmp.lt.s32.totalorder %s245, 23
      %s247 = scalar_select %p246, %s245, 23
      %s248 = smul.addr %s247, 8
      %s249 = scalar_lea.vmem %s7, %s248
      %s250 = smul.u32 8, %s24
      %p251 = scmp.lt.s32.totalorder %s250, 23
      %s252 = scalar_select %p251, %s250, 23
      %s253 = smul.addr %s252, 4
      %s254 = scalar_lea.vmem %s1, %s253
      %s255 = smul.u32 8, %s24
      %s256 = smul.u32 8, %s24
      %p257 = scmp.lt.s32.totalorder %s256, 23
      %s258 = scalar_select %p257, %s256, 23
      %s259 = smul.addr %s258, 8
      %s260 = scalar_lea.vmem %s7, %s259
      %s261 = smul.u32 8, %s24
      %v263 = vld [vmem:[%s254] sm:$0xf]
      %v264 = vld [vmem:[%s254 + $0x4] sm:$0xf]
      %v265 = vld [vmem:[%s254 + $0x8] sm:$0xf]
      %v266 = vld [vmem:[%s254 + $0xc] sm:$0xf]
      %v267 = vld [vmem:[%s254 + $0x10] sm:$0xf]
      %v268 = vld [vmem:[%s254 + $0x14] sm:$0xf]
      %v269 = vld [vmem:[%s254 + $0x18] sm:$0xf]
      %v270 = vld [vmem:[%s254 + $0x1c] sm:$0xf]
      %v271 = vld [vmem:[%s2] sm:$0xf]
      %v272 = vld [vmem:[%s2 + $0x4] sm:$0xf]
      %v273 = vld [vmem:[%s2 + $0x8] sm:$0xf]
      %v274 = vld [vmem:[%s2 + $0xc] sm:$0xf]
      %v275 = vld [vmem:[%s2 + $0x10] sm:$0xf]
      %v276 = vld [vmem:[%s2 + $0x14] sm:$0xf]
      %v277 = vld [vmem:[%s2 + $0x18] sm:$0xf]
      %v278 = vld [vmem:[%s2 + $0x1c] sm:$0xf]
      %v279 = vld [vmem:[%s2 + $0x20] sm:$0xf]
      %v280 = vld [vmem:[%s2 + $0x24] sm:$0xf]
      %v281 = vld [vmem:[%s2 + $0x28] sm:$0xf]
      %v282 = vld [vmem:[%s2 + $0x2c] sm:$0xf]
      %v283 = vld [vmem:[%s2 + $0x30] sm:$0xf]
      %v284 = vld [vmem:[%s2 + $0x34] sm:$0x3]
      %v285 = vld [vmem:[%s3] sm:$0x1]
      %v287 = vlaneseq
      %v288 = vshrl.u32 %v287, 7
      %v289 = vsub.s32 0, %v288
      %v290 = vrot.slane %v285, %v289
      %v300 = vunpack.c.l.b16 %v263
      %v301 = vunpack.c.l.b16 %v264
      %v302 = vunpack.c.l.b16 %v265
      %v303 = vunpack.c.l.b16 %v266
      %v304 = vunpack.c.l.b16 %v267
      %v305 = vunpack.c.l.b16 %v268
      %v306 = vunpack.c.l.b16 %v269
      %v307 = vunpack.c.l.b16 %v270
      %v308 = vpack.c.b16 %v301, %v300
      %v309 = vpack.c.b16 %v303, %v302
      %v310 = vpack.c.b16 %v305, %v304
      %v311 = vpack.c.b16 %v307, %v306
      %v326 = vunpack.c.l.b16 %v271
      %v327 = vunpack.c.l.b16 %v272
      %v328 = vunpack.c.l.b16 %v273
      %v329 = vunpack.c.l.b16 %v274
      %v330 = vunpack.c.l.b16 %v275
      %v331 = vunpack.c.l.b16 %v276
      %v332 = vunpack.c.l.b16 %v277
      %v333 = vunpack.c.l.b16 %v278
      %v334 = vunpack.c.l.b16 %v279
      %v335 = vunpack.c.l.b16 %v280
      %v336 = vunpack.c.l.b16 %v281
      %v337 = vunpack.c.l.b16 %v282
      %v338 = vunpack.c.l.b16 %v283
      %v339 = vunpack.c.l.b16 %v284
      %v340 = vpack.c.b16 %v327, %v326
      %v341 = vpack.c.b16 %v329, %v328
      %v342 = vpack.c.b16 %v331, %v330
      %v343 = vpack.c.b16 %v333, %v332
      %v344 = vpack.c.b16 %v335, %v334
      %v345 = vpack.c.b16 %v337, %v336
      %v346 = vpack.c.b16 %v339, %v338
      %vm353 = vcmask 883712
      %v355 = vsel %vm353, %v308, 0
      %v358 = vsel %vm353, %v309, 0
      %v361 = vsel %vm353, %v310, 0
      %v364 = vsel %vm353, %v311, 0
      %vm366 = vcmask 1045504
      %v368 = vsel %vm366, %v346, 0
      %370 = vmatprep.subr.bf16.mxu0 0
      %371 = vmatpush1.bf16.msra.mxu0 %v340
      %372 = vmatprep.subr.bf16.mxu0 0
      %373 = vmatpush1.bf16.msra.mxu0 %v341
      %374 = vmatprep.subr.bf16.mxu0 0
      %375 = vmatpush1.bf16.msra.mxu0 %v342
      %376 = vmatprep.subr.bf16.mxu0 0
      %377 = vmatpush1.bf16.msra.mxu0 %v343
      %378 = vmatprep.subr.bf16.mxu0 0
      %379 = vmatpush1.bf16.msra.mxu0 %v344
      %380 = vmatprep.subr.bf16.mxu0 0
      %381 = vmatpush1.bf16.msra.mxu0 %v345
      %382 = vmatprep.subr.bf16.mxu0 0
      %383 = vmatpush1.bf16.msra.mxu0 %v368
      %384 = vmatprep.subr.bf16.mxu0 0
      %385 = vmatpush1.bf16.msra.mxu0 0
      %386 = vmatprep.subr.bf16.mxu0 0
      %387 = vmatpush1.bf16.msra.mxu0 0
      %388 = vmatprep.subr.bf16.mxu0 0
      %389 = vmatpush1.bf16.msra.mxu0 0
      %390 = vmatprep.subr.bf16.mxu0 0
      %391 = vmatpush1.bf16.msra.mxu0 0
      %392 = vmatprep.subr.bf16.mxu0 0
      %393 = vmatpush1.bf16.msra.mxu0 0
      %394 = vmatprep.subr.bf16.mxu0 0
      %395 = vmatpush1.bf16.msra.mxu0 0
      %396 = vmatprep.subr.bf16.mxu0 0
      %397 = vmatpush1.bf16.msra.mxu0 0
      %398 = vmatprep.subr.bf16.mxu0 0
      %399 = vmatpush1.bf16.msra.mxu0 0
      %400 = vmatprep.subr.bf16.mxu0 0
      %401 = vmatpush1.bf16.msra.mxu0 0
      %402 = vmatprep.mubr.bf16.mxu0 0
      %403 = vmatmul.mubr.bf16.gmra.mrb[0].mxu0 %v355
      %v404 = vpop.f32.mrb[0].mxu0
      %v405 = vadd.f32 %v290, %v404
      %v406 = vpop.f32.mrb[0].mxu0
      %v407 = vpop.f32.mrb[0].mxu0
      %v408 = vadd.f32 %v290, %v407
      %v409 = vpop.f32.mrb[0].mxu0
      %410 = vmatprep.mubr.bf16.mxu0 0
      %411 = vmatmul.mubr.bf16.gmra.mrb[0].mxu0 %v358
      %v412 = vpop.f32.mrb[0].mxu0
      %v413 = vadd.f32 %v290, %v412
      %v414 = vpop.f32.mrb[0].mxu0
      %v415 = vpop.f32.mrb[0].mxu0
      %v416 = vadd.f32 %v290, %v415
      %v417 = vpop.f32.mrb[0].mxu0
      %418 = vmatprep.mubr.bf16.mxu0 0
      %419 = vmatmul.mubr.bf16.gmra.mrb[0].mxu0 %v361
      %v420 = vpop.f32.mrb[0].mxu0
      %v421 = vadd.f32 %v290, %v420
      %v422 = vpop.f32.mrb[0].mxu0
      %v423 = vpop.f32.mrb[0].mxu0
      %v424 = vadd.f32 %v290, %v423
      %v425 = vpop.f32.mrb[0].mxu0
      %426 = vmatprep.mubr.bf16.mxu0 0
      %427 = vmatmul.mubr.bf16.gmra.mrb[0].mxu0 %v364
      %v428 = vpop.f32.mrb[0].mxu0
      %v429 = vadd.f32 %v290, %v428
      %v430 = vpop.f32.mrb[0].mxu0
      %v431 = vpop.f32.mrb[0].mxu0
      %v432 = vadd.f32 %v290, %v431
      %v433 = vpop.f32.mrb[0].mxu0
      %434 = vdwg.mxu0
      %v435 = vxor.u32 %v405, 2147483648
      %v436 = vxor.u32 %v408, 2147483648
      %v437 = vxor.u32 %v413, 2147483648
      %v438 = vxor.u32 %v416, 2147483648
      %v439 = vxor.u32 %v421, 2147483648
      %v440 = vxor.u32 %v424, 2147483648
      %v441 = vxor.u32 %v429, 2147483648
      %v442 = vxor.u32 %v432, 2147483648
      %v443 = vmul.f32 %v435, 1.442695
      %v444 = vpow.pop %v443
      %v445 = vmul.f32 %v436, 1.442695
      %v446 = vpow.pop %v445
      %v447 = vmul.f32 %v437, 1.442695
      %v448 = vpow.pop %v447
      %v449 = vmul.f32 %v438, 1.442695
      %v450 = vpow.pop %v449
      %v451 = vmul.f32 %v439, 1.442695
      %v452 = vpow.pop %v451
      %v453 = vmul.f32 %v440, 1.442695
      %v454 = vpow.pop %v453
      %v455 = vmul.f32 %v441, 1.442695
      %v456 = vpow.pop %v455
      %v457 = vmul.f32 %v442, 1.442695
      %v458 = vpow.pop %v457
      %v459 = vadd.f32 %v444, 1.0
      %v460 = vadd.f32 %v446, 1.0
      %v461 = vadd.f32 %v448, 1.0
      %v462 = vadd.f32 %v450, 1.0
      %v463 = vadd.f32 %v452, 1.0
      %v464 = vadd.f32 %v454, 1.0
      %v465 = vadd.f32 %v456, 1.0
      %v466 = vadd.f32 %v458, 1.0
      %v467 = vrcp.pop %v459
      %v468 = vmul.f32 1.0, %v467
      %v469 = vrcp.pop %v460
      %v470 = vmul.f32 1.0, %v469
      %v471 = vrcp.pop %v461
      %v472 = vmul.f32 1.0, %v471
      %v473 = vrcp.pop %v462
      %v474 = vmul.f32 1.0, %v473
      %v475 = vrcp.pop %v463
      %v476 = vmul.f32 1.0, %v475
      %v477 = vrcp.pop %v464
      %v478 = vmul.f32 1.0, %v477
      %v479 = vrcp.pop %v465
      %v480 = vmul.f32 1.0, %v479
      %v481 = vrcp.pop %v466
      %v482 = vmul.f32 1.0, %v481
      %v483 = vmul.f32 %v405, %v468
      %v484 = vmul.f32 %v408, %v470
      %v485 = vmul.f32 %v413, %v472
      %v486 = vmul.f32 %v416, %v474
      %v487 = vmul.f32 %v421, %v476
      %v488 = vmul.f32 %v424, %v478
      %v489 = vmul.f32 %v429, %v480
      %v490 = vmul.f32 %v432, %v482
      %v491 = vpack.c.bf16 %v484, %v483
      %v492 = vpack.c.bf16 %v486, %v485
      %v493 = vpack.c.bf16 %v488, %v487
      %v494 = vpack.c.bf16 %v490, %v489
      %v495 = vld [vmem:[%s4] sm:$0xf]
      %v496 = vld [vmem:[%s4 + $0x4] sm:$0xf]
      %v497 = vld [vmem:[%s4 + $0x8] sm:$0xf]
      %v498 = vld [vmem:[%s4 + $0xc] sm:$0xf]
      %v499 = vld [vmem:[%s4 + $0x10] sm:$0xf]
      %v500 = vld [vmem:[%s4 + $0x14] sm:$0xf]
      %v501 = vld [vmem:[%s4 + $0x18] sm:$0xf]
      %v502 = vld [vmem:[%s4 + $0x1c] sm:$0xf]
      %v503 = vld [vmem:[%s4 + $0x20] sm:$0xf]
      %v504 = vld [vmem:[%s4 + $0x24] sm:$0xf]
      %v505 = vld [vmem:[%s4 + $0x28] sm:$0xf]
      %v506 = vld [vmem:[%s4 + $0x2c] sm:$0xf]
      %v507 = vld [vmem:[%s4 + $0x30] sm:$0xf]
      %v508 = vld [vmem:[%s4 + $0x34] sm:$0xf]
      %v509 = vld [vmem:[%s4 + $0x38] sm:$0xf]
      %v510 = vld [vmem:[%s4 + $0x3c] sm:$0xf]
      %v511 = vld [vmem:[%s5] sm:$0x1]
      %v513 = vlaneseq
      %v514 = vshrl.u32 %v513, 7
      %v515 = vsub.s32 0, %v514
      %v516 = vrot.slane %v511, %v515
      %v534 = vunpack.c.l.b16 %v495
      %v535 = vunpack.c.l.b16 %v496
      %v536 = vunpack.c.l.b16 %v497
      %v537 = vunpack.c.l.b16 %v498
      %v538 = vunpack.c.l.b16 %v499
      %v539 = vunpack.c.l.b16 %v500
      %v540 = vunpack.c.l.b16 %v501
      %v541 = vunpack.c.l.b16 %v502
      %v542 = vunpack.c.l.b16 %v503
      %v543 = vunpack.c.l.b16 %v504
      %v544 = vunpack.c.l.b16 %v505
      %v545 = vunpack.c.l.b16 %v506
      %v546 = vunpack.c.l.b16 %v507
      %v547 = vunpack.c.l.b16 %v508
      %v548 = vunpack.c.l.b16 %v509
      %v549 = vunpack.c.l.b16 %v510
      %v550 = vpack.c.b16 %v535, %v534
      %v551 = vpack.c.b16 %v537, %v536
      %v552 = vpack.c.b16 %v539, %v538
      %v553 = vpack.c.b16 %v541, %v540
      %v554 = vpack.c.b16 %v543, %v542
      %v555 = vpack.c.b16 %v545, %v544
      %v556 = vpack.c.b16 %v547, %v546
      %v557 = vpack.c.b16 %v549, %v548
      %566 = vmatprep.subr.bf16.mxu0 0
      %567 = vmatpush1.bf16.msra.mxu0 %v550
      %568 = vmatprep.subr.bf16.mxu0 0
      %569 = vmatpush1.bf16.msra.mxu0 %v551
      %570 = vmatprep.subr.bf16.mxu0 0
      %571 = vmatpush1.bf16.msra.mxu0 %v552
      %572 = vmatprep.subr.bf16.mxu0 0
      %573 = vmatpush1.bf16.msra.mxu0 %v553
      %574 = vmatprep.subr.bf16.mxu0 0
      %575 = vmatpush1.bf16.msra.mxu0 %v554
      %576 = vmatprep.subr.bf16.mxu0 0
      %577 = vmatpush1.bf16.msra.mxu0 %v555
      %578 = vmatprep.subr.bf16.mxu0 0
      %579 = vmatpush1.bf16.msra.mxu0 %v556
      %580 = vmatprep.subr.bf16.mxu0 0
      %581 = vmatpush1.bf16.msra.mxu0 %v557
      %582 = vmatprep.subr.bf16.mxu0 0
      %583 = vmatpush1.bf16.msra.mxu0 0
      %584 = vmatprep.subr.bf16.mxu0 0
      %585 = vmatpush1.bf16.msra.mxu0 0
      %586 = vmatprep.subr.bf16.mxu0 0
      %587 = vmatpush1.bf16.msra.mxu0 0
      %588 = vmatprep.subr.bf16.mxu0 0
      %589 = vmatpush1.bf16.msra.mxu0 0
      %590 = vmatprep.subr.bf16.mxu0 0
      %591 = vmatpush1.bf16.msra.mxu0 0
      %592 = vmatprep.subr.bf16.mxu0 0
      %593 = vmatpush1.bf16.msra.mxu0 0
      %594 = vmatprep.subr.bf16.mxu0 0
      %595 = vmatpush1.bf16.msra.mxu0 0
      %596 = vmatprep.subr.bf16.mxu0 0
      %597 = vmatpush1.bf16.msra.mxu0 0
      %598 = vmatprep.mubr.bf16.mxu0 0
      %599 = vmatmul.mubr.bf16.gmra.mrb[0].mxu0 %v491
      %v600 = vpop.f32.mrb[0].mxu0
      %v601 = vadd.f32 %v516, %v600
      %v602 = vpop.f32.mrb[0].mxu0
      %v603 = vpop.f32.mrb[0].mxu0
      %v604 = vadd.f32 %v516, %v603
      %v605 = vpop.f32.mrb[0].mxu0
      %606 = vmatprep.mubr.bf16.mxu0 0
      %607 = vmatmul.mubr.bf16.gmra.mrb[0].mxu0 %v492
      %v608 = vpop.f32.mrb[0].mxu0
      %v609 = vadd.f32 %v516, %v608
      %v610 = vpop.f32.mrb[0].mxu0
      %v611 = vpop.f32.mrb[0].mxu0
      %v612 = vadd.f32 %v516, %v611
      %v613 = vpop.f32.mrb[0].mxu0
      %614 = vmatprep.mubr.bf16.mxu0 0
      %615 = vmatmul.mubr.bf16.gmra.mrb[0].mxu0 %v493
      %v616 = vpop.f32.mrb[0].mxu0
      %v617 = vadd.f32 %v516, %v616
      %v618 = vpop.f32.mrb[0].mxu0
      %v619 = vpop.f32.mrb[0].mxu0
      %v620 = vadd.f32 %v516, %v619
      %v621 = vpop.f32.mrb[0].mxu0
      %622 = vmatprep.mubr.bf16.mxu0 0
      %623 = vmatmul.mubr.bf16.gmra.mrb[0].mxu0 %v494
      %v624 = vpop.f32.mrb[0].mxu0
      %v625 = vadd.f32 %v516, %v624
      %v626 = vpop.f32.mrb[0].mxu0
      %v627 = vpop.f32.mrb[0].mxu0
      %v628 = vadd.f32 %v516, %v627
      %v629 = vpop.f32.mrb[0].mxu0
      %630 = vdwg.mxu0
      %v631 = vxor.u32 %v601, 2147483648
      %v632 = vxor.u32 %v604, 2147483648
      %v633 = vxor.u32 %v609, 2147483648
      %v634 = vxor.u32 %v612, 2147483648
      %v635 = vxor.u32 %v617, 2147483648
      %v636 = vxor.u32 %v620, 2147483648
      %v637 = vxor.u32 %v625, 2147483648
      %v638 = vxor.u32 %v628, 2147483648
      %v639 = vmul.f32 %v631, 1.442695
      %v640 = vpow.pop %v639
      %v641 = vmul.f32 %v632, 1.442695
      %v642 = vpow.pop %v641
      %v643 = vmul.f32 %v633, 1.442695
      %v644 = vpow.pop %v643
      %v645 = vmul.f32 %v634, 1.442695
      %v646 = vpow.pop %v645
      %v647 = vmul.f32 %v635, 1.442695
      %v648 = vpow.pop %v647
      %v649 = vmul.f32 %v636, 1.442695
      %v650 = vpow.pop %v649
      %v651 = vmul.f32 %v637, 1.442695
      %v652 = vpow.pop %v651
      %v653 = vmul.f32 %v638, 1.442695
      %v654 = vpow.pop %v653
      %v655 = vadd.f32 %v640, 1.0
      %v656 = vadd.f32 %v642, 1.0
      %v657 = vadd.f32 %v644, 1.0
      %v658 = vadd.f32 %v646, 1.0
      %v659 = vadd.f32 %v648, 1.0
      %v660 = vadd.f32 %v650, 1.0
      %v661 = vadd.f32 %v652, 1.0
      %v662 = vadd.f32 %v654, 1.0
      %v663 = vrcp.pop %v655
      %v664 = vmul.f32 1.0, %v663
      %v665 = vrcp.pop %v656
      %v666 = vmul.f32 1.0, %v665
      %v667 = vrcp.pop %v657
      %v668 = vmul.f32 1.0, %v667
      %v669 = vrcp.pop %v658
      %v670 = vmul.f32 1.0, %v669
      %v671 = vrcp.pop %v659
      %v672 = vmul.f32 1.0, %v671
      %v673 = vrcp.pop %v660
      %v674 = vmul.f32 1.0, %v673
      %v675 = vrcp.pop %v661
      %v676 = vmul.f32 1.0, %v675
      %v677 = vrcp.pop %v662
      %v678 = vmul.f32 1.0, %v677
      %v679 = vld [vmem:[%s6] sm:$0xff]
      %v680 = vlaneseq
      %v681 = vshrl.u32 %v680, 7
      %v682 = vsub.s32 0, %v681
      %v683 = vrot.slane %v679, %v682
      %v684 = vmul.f32 %v664, %v683
      %v685 = vmul.f32 %v666, %v683
      %v686 = vmul.f32 %v668, %v683
      %v687 = vmul.f32 %v670, %v683
      %v688 = vmul.f32 %v672, %v683
      %v689 = vmul.f32 %v674, %v683
      %v690 = vmul.f32 %v676, %v683
      %v691 = vmul.f32 %v678, %v683
      %v692 = vmul.f32 %v664, %v664
      %v693 = vmul.f32 %v666, %v666
      %v694 = vmul.f32 %v668, %v668
      %v695 = vmul.f32 %v670, %v670
      %v696 = vmul.f32 %v672, %v672
      %v697 = vmul.f32 %v674, %v674
      %v698 = vmul.f32 %v676, %v676
      %v699 = vmul.f32 %v678, %v678
      %v700 = vlaneseq
      %v701 = vshrl.u32 %v700, 7
      %v702 = vsub.s32 1, %v701
      %v703 = vrot.slane %v679, %v702
      %v704 = vmul.f32 %v692, %v703
      %v705 = vmul.f32 %v693, %v703
      %v706 = vmul.f32 %v694, %v703
      %v707 = vmul.f32 %v695, %v703
      %v708 = vmul.f32 %v696, %v703
      %v709 = vmul.f32 %v697, %v703
      %v710 = vmul.f32 %v698, %v703
      %v711 = vmul.f32 %v699, %v703
      %v712 = vadd.f32 %v684, %v704
      %v713 = vadd.f32 %v685, %v705
      %v714 = vadd.f32 %v686, %v706
      %v715 = vadd.f32 %v687, %v707
      %v716 = vadd.f32 %v688, %v708
      %v717 = vadd.f32 %v689, %v709
      %v718 = vadd.f32 %v690, %v710
      %v719 = vadd.f32 %v691, %v711
      %v720 = vlaneseq
      %v721 = vshrl.u32 %v720, 7
      %v722 = vsub.s32 2, %v721
      %v723 = vrot.slane %v679, %v722
      %v724 = vadd.f32 %v712, %v723
      %v725 = vadd.f32 %v713, %v723
      %v726 = vadd.f32 %v714, %v723
      %v727 = vadd.f32 %v715, %v723
      %v728 = vadd.f32 %v716, %v723
      %v729 = vadd.f32 %v717, %v723
      %v730 = vadd.f32 %v718, %v723
      %v731 = vadd.f32 %v719, %v723
      %s732 = sld [smem:[#allocation3 + %s24]]
      %s733 = scvt.s32.f32 %s732
      %s734 = sshra.s32 %s24, 7
      %s735 = sand.u32 %s24, 127
      %s736 = sadd.s32 %s734, 1
      %s737 = smul.u32 %s736, 128
      %s738 = sshra.s32 %s24, 7
      %s739 = sand.u32 %s24, 127
      %s740 = sadd.s32 %s737, %s739
      %s741 = sld [smem:[#allocation3 + %s740]]
      %s742 = scvt.s32.f32 %s741
      %v743 = vlaneseq
      %v744 = vshrl.u32 %v743, 7
      %v745 = vadd.s32 %v744, 8
      %v746 = vadd.s32 %v744, 16
      %v747 = vadd.s32 %v744, 24
      %v748 = vadd.s32 %v744, 32
      %v749 = vadd.s32 %v744, 40
      %v750 = vadd.s32 %v744, 48
      %v751 = vadd.s32 %v744, 56
      %v752 = vmul.u32 %v744, 4
      %v753 = vmul.u32 %v745, 4
      %v754 = vmul.u32 %v746, 4
      %v755 = vmul.u32 %v747, 4
      %v756 = vmul.u32 %v748, 4
      %v757 = vmul.u32 %v749, 4
      %v758 = vmul.u32 %v750, 4
      %v759 = vmul.u32 %v751, 4
      %v760 = vcvt.s32.f32 %v752
      %v761 = vcvt.s32.f32 %v753
      %v762 = vcvt.s32.f32 %v754
      %v763 = vcvt.s32.f32 %v755
      %v764 = vcvt.s32.f32 %v756
      %v765 = vcvt.s32.f32 %v757
      %v766 = vcvt.s32.f32 %v758
      %v767 = vcvt.s32.f32 %v759
      %v768 = vstv %s733
      %v769 = vadd.f32 %v768, %v760
      %v770 = vadd.f32 %v768, %v761
      %v771 = vadd.f32 %v768, %v762
      %v772 = vadd.f32 %v768, %v763
      %v773 = vadd.f32 %v768, %v764
      %v774 = vadd.f32 %v768, %v765
      %v775 = vadd.f32 %v768, %v766
      %v776 = vadd.f32 %v768, %v767
      %v777 = vadd.f32 %v769, 0.0
      %v778 = vadd.f32 %v770, 0.0
      %v779 = vadd.f32 %v771, 0.0
      %v780 = vadd.f32 %v772, 0.0
      %v781 = vadd.f32 %v773, 0.0
      %v782 = vadd.f32 %v774, 0.0
      %v783 = vadd.f32 %v775, 0.0
      %v784 = vadd.f32 %v776, 0.0
      %v785 = vadd.f32 %v777, 0.5
      %v786 = vadd.f32 %v778, 0.5
      %v787 = vadd.f32 %v779, 0.5
      %v788 = vadd.f32 %v780, 0.5
      %v789 = vadd.f32 %v781, 0.5
      %v790 = vadd.f32 %v782, 0.5
      %v791 = vadd.f32 %v783, 0.5
      %v792 = vadd.f32 %v784, 0.5
      %v793 = vmul.f32 %v785, 0.05
      %v794 = vmul.f32 %v786, 0.05
      %v795 = vmul.f32 %v787, 0.05
      %v796 = vmul.f32 %v788, 0.05
      %v797 = vmul.f32 %v789, 0.05
      %v798 = vmul.f32 %v790, 0.05
      %v799 = vmul.f32 %v791, 0.05
      %v800 = vmul.f32 %v792, 0.05
      %v801 = vfloor.f32 %v793
      %v802 = vfloor.f32 %v794
      %v803 = vfloor.f32 %v795
      %v804 = vfloor.f32 %v796
      %v805 = vfloor.f32 %v797
      %v806 = vfloor.f32 %v798
      %v807 = vfloor.f32 %v799
      %v808 = vfloor.f32 %v800
      %v809 = vmul.f32 %v801, 20.0
      %v810 = vmul.f32 %v802, 20.0
      %v811 = vmul.f32 %v803, 20.0
      %v812 = vmul.f32 %v804, 20.0
      %v813 = vmul.f32 %v805, 20.0
      %v814 = vmul.f32 %v806, 20.0
      %v815 = vmul.f32 %v807, 20.0
      %v816 = vmul.f32 %v808, 20.0
      %v817 = vsub.f32 %v777, %v809
      %v818 = vsub.f32 %v778, %v810
      %v819 = vsub.f32 %v779, %v811
      %v820 = vsub.f32 %v780, %v812
      %v821 = vsub.f32 %v781, %v813
      %v822 = vsub.f32 %v782, %v814
      %v823 = vsub.f32 %v783, %v815
      %v824 = vsub.f32 %v784, %v816
      %v825 = vstv %s742
      %v826 = vadd.f32 %v825, %v801
      %v827 = vadd.f32 %v825, %v802
      %v828 = vadd.f32 %v825, %v803
      %v829 = vadd.f32 %v825, %v804
      %v830 = vadd.f32 %v825, %v805
      %v831 = vadd.f32 %v825, %v806
      %v832 = vadd.f32 %v825, %v807
      %v833 = vadd.f32 %v825, %v808
      %v834 = vadd.f32 %v826, 0.5
      %v835 = vadd.f32 %v827, 0.5
      %v836 = vadd.f32 %v828, 0.5
      %v837 = vadd.f32 %v829, 0.5
      %v838 = vadd.f32 %v830, 0.5
      %v839 = vadd.f32 %v831, 0.5
      %v840 = vadd.f32 %v832, 0.5
      %v841 = vadd.f32 %v833, 0.5
      %v842 = vmul.f32 %v834, 0.0625
      %v843 = vmul.f32 %v835, 0.0625
      %v844 = vmul.f32 %v836, 0.0625
      %v845 = vmul.f32 %v837, 0.0625
      %v846 = vmul.f32 %v838, 0.0625
      %v847 = vmul.f32 %v839, 0.0625
      %v848 = vmul.f32 %v840, 0.0625
      %v849 = vmul.f32 %v841, 0.0625
      %v850 = vfloor.f32 %v842
      %v851 = vfloor.f32 %v843
      %v852 = vfloor.f32 %v844
      %v853 = vfloor.f32 %v845
      %v854 = vfloor.f32 %v846
      %v855 = vfloor.f32 %v847
      %v856 = vfloor.f32 %v848
      %v857 = vfloor.f32 %v849
      %v858 = vmul.f32 %v850, 16.0
      %v859 = vmul.f32 %v851, 16.0
      %v860 = vmul.f32 %v852, 16.0
      %v861 = vmul.f32 %v853, 16.0
      %v862 = vmul.f32 %v854, 16.0
      %v863 = vmul.f32 %v855, 16.0
      %v864 = vmul.f32 %v856, 16.0
      %v865 = vmul.f32 %v857, 16.0
      %v866 = vsub.f32 %v826, %v858
      %v867 = vsub.f32 %v827, %v859
      %v868 = vsub.f32 %v828, %v860
      %v869 = vsub.f32 %v829, %v861
      %v870 = vsub.f32 %v830, %v862
      %v871 = vsub.f32 %v831, %v863
      %v872 = vsub.f32 %v832, %v864
      %v873 = vsub.f32 %v833, %v865
      %v874 = vlaneseq
      %v875 = vshrl.u32 %v874, 7
      %v876 = vsub.s32 3, %v875
      %v877 = vrot.slane %v679, %v876
      %v878 = vmul.f32 %v817, %v877
      %v879 = vmul.f32 %v818, %v877
      %v880 = vmul.f32 %v819, %v877
      %v881 = vmul.f32 %v820, %v877
      %v882 = vmul.f32 %v821, %v877
      %v883 = vmul.f32 %v822, %v877
      %v884 = vmul.f32 %v823, %v877
      %v885 = vmul.f32 %v824, %v877
      %v886 = vadd.f32 %v724, %v878
      %v887 = vadd.f32 %v725, %v879
      %v888 = vadd.f32 %v726, %v880
      %v889 = vadd.f32 %v727, %v881
      %v890 = vadd.f32 %v728, %v882
      %v891 = vadd.f32 %v729, %v883
      %v892 = vadd.f32 %v730, %v884
      %v893 = vadd.f32 %v731, %v885
      %v894 = vlaneseq
      %v895 = vshrl.u32 %v894, 7
      %v896 = vsub.s32 4, %v895
      %v897 = vrot.slane %v679, %v896
      %v898 = vmul.f32 %v866, %v897
      %v899 = vmul.f32 %v867, %v897
      %v900 = vmul.f32 %v868, %v897
      %v901 = vmul.f32 %v869, %v897
      %v902 = vmul.f32 %v870, %v897
      %v903 = vmul.f32 %v871, %v897
      %v904 = vmul.f32 %v872, %v897
      %v905 = vmul.f32 %v873, %v897
      %v906 = vadd.f32 %v886, %v898
      %v907 = vadd.f32 %v887, %v899
      %v908 = vadd.f32 %v888, %v900
      %v909 = vadd.f32 %v889, %v901
      %v910 = vadd.f32 %v890, %v902
      %v911 = vadd.f32 %v891, %v903
      %v912 = vadd.f32 %v892, %v904
      %v913 = vadd.f32 %v893, %v905
      %914 = vst [vmem:[%s260] sm:$0xff] %v906
      %915 = vst [vmem:[%s260 + $0x8] sm:$0xff] %v907
      %916 = vst [vmem:[%s260 + $0x10] sm:$0xff] %v908
      %917 = vst [vmem:[%s260 + $0x18] sm:$0xff] %v909
      %918 = vst [vmem:[%s260 + $0x20] sm:$0xff] %v910
      %919 = vst [vmem:[%s260 + $0x28] sm:$0xff] %v911
      %920 = vst [vmem:[%s260 + $0x30] sm:$0xff] %v912
      %921 = vst [vmem:[%s260 + $0x38] sm:$0xff] %v913
      %s922 = smul.u32 8, %s24
      %p923 = scmp.lt.s32.totalorder %s922, 23
      %s924 = scalar_select %p923, %s922, 23
      %s925 = smul.addr %s924, 8
      %s926 = scalar_lea.vmem %s7, %s925
      // Predicated region
      $region45: #{_lambda_.1} parent=43 // pred_check
        %p927 = pneg %p173
      $region46: #{_lambda_.1} parent=43 // pred_check_branch
        %929 = sbr.rel (%p927) target = $region48
      $region47: #{_lambda_.1} parent=43 // pred_region
        %s930 = smul.u32 8, %s24
      $region48: #{_lambda_.1} parent=43 // pred_fallthru
        _
    $region44: #{_lambda_.1} parent=5 // pred_fallthru
      _
    %p931 = scmp.le.s32.totalorder 2, %s19
    // Predicated region
    $region49: #{_lambda_.1} parent=5 // pred_check
      %p932 = pneg %p931
    $region50: #{_lambda_.1} parent=5 // pred_check_branch
      %934 = sbr.rel (%p932) target = $region52
    $region51: #{_lambda_.1} parent=5 // pred_region
      %s935 = ssub.s32 %s19, 2
      // Predicated region
      $region53: #{_lambda_.1} parent=51 // pred_check
        %p936 = pneg %p179
      $region54: #{_lambda_.1} parent=51 // pred_check_branch
        %938 = sbr.rel (%p936) target = $region56
      $region55: #{_lambda_.1} parent=51 // pred_region
        %s939 = smul.u32 8, %s25
        %p940 = scmp.lt.s32.totalorder %s939, 23
        %s941 = scalar_select %p940, %s939, 23
        %s942 = smul.addr %s941, 8
        %s943 = scalar_lea.vmem %s7, %s942
      $region56: #{_lambda_.1} parent=51 // pred_fallthru
        _
    $region52: #{_lambda_.1} parent=5 // pred_fallthru
      _
  $region6: #{_lambda_.1} parent=0 // loop_footer
    %s23 = sadd.s32 1, %s19
  $region7: #{_lambda_.1} parent=0 // loop_footer_branch
    %18 = sbr.rel target = $region3
  $region8: #{_lambda_.1} parent=0 // loop_exit
    _

</llo_original>
